<compile_context>
chip_gen: v6e
topology: v6e:2x2x1
jax: 0.10.0
libtpu: 0.0.40
codegen_flags: <defaults>
</compile_context>

<pallas_src>
import functools

import jax
import jax.numpy as jnp
from jax.experimental import pallas as pl
from jax.experimental.pallas import tpu as pltpu

_LANES = 128
_K_SLABS = 4                    # independent (8,128) accumulation slabs / qty
_ACC_ROWS = _K_SLABS * 8        # 32-row resident accumulator slab per quantity


def _is_v7x():
    try:
        kind = jax.devices()[0].device_kind.lower()
    except Exception:
        return False
    return ("v7" in kind) or ("7x" in kind)


def _topopt_sum_kernel(rho_ref, jel_ref, acc_ref, *,
                       tiles_per_core, num_full_tiles, rows_rem):
    """Accumulate per-core partial sums of Jelem and nn_rho.

    rho_ref / jel_ref : VMEM [row_tile, 128] tile in the input's native dtype
                        (upcast to f32 here, after the DMA).
    acc_ref           : VMEM f32[1, 2, 32, 128] resident per-core accumulator
                        ([0, 0] accumulates Jelem, [0, 1] accumulates nn_rho).
    """
    c = pl.program_id(0)
    t = pl.program_id(1)
    blk = c * tiles_per_core + t          # global tile index (no duplicates)

    @pl.when(t == 0)
    def _init():
        acc_ref[...] = jnp.zeros_like(acc_ref)

    def _reduce_full(x):
        # (row_tile, 128) -> (row_tile/32, 32, 128) -> sum over the leading
        # axis: K=4 independent per-vreg VALU chains, no cross-lane work.
        return jnp.sum(x.reshape(-1, _ACC_ROWS, _LANES), axis=0)

    @pl.when(blk < num_full_tiles)
    def _full():
        acc_ref[0, 0] = acc_ref[0, 0] + _reduce_full(
            jel_ref[...].astype(jnp.float32))
        acc_ref[0, 1] = acc_ref[0, 1] + _reduce_full(
            rho_ref[...].astype(jnp.float32))

    if rows_rem:  # static Python branch: emitted only if a partial tile exists
        full_slabs = rows_rem // _ACC_ROWS
        tail_rows = rows_rem % _ACC_ROWS
        needed = (full_slabs + (1 if tail_rows else 0)) * _ACC_ROWS

        @pl.when(blk == num_full_tiles)
        def _partial():
            # Static slice of the ref: only load slabs containing valid rows.
            # Rows past `rows_rem` inside the straddling slab are stale VMEM
            # and are removed with a true select (never multiplied).
            jel = jel_ref[:needed, :].astype(jnp.float32)
            rho = rho_ref[:needed, :].astype(jnp.float32)
            dj = jnp.zeros((_ACC_ROWS, _LANES), jnp.float32)
            dr = jnp.zeros((_ACC_ROWS, _LANES), jnp.float32)
            if full_slabs:
                dj = dj + jnp.sum(
                    jel[:full_slabs * _ACC_ROWS].reshape(-1, _ACC_ROWS, _LANES),
                    axis=0)
                dr = dr + jnp.sum(
                    rho[:full_slabs * _ACC_ROWS].reshape(-1, _ACC_ROWS, _LANES),
                    axis=0)
            if tail_rows:
                row_ids = jax.lax.broadcasted_iota(
                    jnp.int32, (_ACC_ROWS, _LANES), 0)
                keep = row_ids < tail_rows
                dj = dj + jnp.where(keep, jel[full_slabs * _ACC_ROWS:needed], 0.0)
                dr = dr + jnp.where(keep, rho[full_slabs * _ACC_ROWS:needed], 0.0)
            acc_ref[0, 0] = acc_ref[0, 0] + dj
            acc_ref[0, 1] = acc_ref[0, 1] + dr


def _partial_sums(rho2, jel2, *, row_tile, num_full_tiles, rows_rem,
                  num_split, vmem_limit_bytes):
    """Run the Pallas dual reduction; returns f32[num_split, 2, 32, 128]."""
    total_tiles = num_full_tiles + (1 if rows_rem else 0)
    if total_tiles % num_split != 0:
        num_split = 1
    tiles_per_core = total_tiles // num_split

    def in_index_map(c, t):
        return (c * tiles_per_core + t, 0)

    kernel = functools.partial(
        _topopt_sum_kernel,
        tiles_per_core=tiles_per_core,
        num_full_tiles=num_full_tiles,
        rows_rem=rows_rem)

    if num_split > 1:
        dim_sem = (pltpu.CORE_PARALLEL, pltpu.ARBITRARY)   # real 2-TC sharding
    else:
        dim_sem = ("arbitrary", "arbitrary")

    bytes_accessed = (int(rho2.size) * rho2.dtype.itemsize
                      + int(jel2.size) * jel2.dtype.itemsize
                      + num_split * 2 * _ACC_ROWS * _LANES * 4)

    return pl.pallas_call(
        kernel,
        out_shape=jax.ShapeDtypeStruct(
            (num_split, 2, _ACC_ROWS, _LANES), jnp.float32),
        grid=(num_split, tiles_per_core),
        in_specs=[
            pl.BlockSpec((row_tile, _LANES), in_index_map),   # nn_rho
            pl.BlockSpec((row_tile, _LANES), in_index_map),   # Jelem
        ],
        out_specs=pl.BlockSpec((1, 2, _ACC_ROWS, _LANES),
                               lambda c, t: (c, 0, 0, 0)),
        compiler_params=pltpu.CompilerParams(
            dimension_semantics=dim_sem,
            vmem_limit_bytes=vmem_limit_bytes),
        cost_estimate=pl.CostEstimate(
            flops=int(rho2.size) + int(jel2.size),
            transcendentals=0,
            bytes_accessed=bytes_accessed),
    )(rho2, jel2)


def topopt_loss(nn_rho, Jelem, desiredVolumeFraction, penal, obj0,
                *, max_row_tile=None, force_num_split=None):
    del penal  # unused in the forward pass (matches the torch module)

    def _prep(x):
        x = jnp.ravel(jnp.asarray(x))
        if x.dtype.name not in ("float32", "bfloat16"):
            x = x.astype(jnp.float32)   # rare path: one wrapper-side convert
        return x

    rho = _prep(nn_rho)
    jel = _prep(Jelem)
    assert rho.size == jel.size, "expect one Jelem per density element"
    n = int(rho.size)
    assert n > 0

    is_v7 = _is_v7x()
    if max_row_tile is None:
        max_row_tile = 8192 if is_v7 else 2048          # 4 MiB / 1 MiB f32 tiles
    max_row_tile = max(_ACC_ROWS, (max_row_tile // _ACC_ROWS) * _ACC_ROWS)
    vmem_limit = (48 << 20) if is_v7 else (32 << 20)

    n_rows = n // _LANES
    jel_sum = jnp.zeros((), jnp.float32)
    rho_sum = jnp.zeros((), jnp.float32)

    if n_rows >= _ACC_ROWS:
        row_tile = min(max_row_tile, (n_rows // _ACC_ROWS) * _ACC_ROWS)
        num_full_tiles = n_rows // row_tile
        rows_rem = n_rows - num_full_tiles * row_tile
        total_tiles = num_full_tiles + (1 if rows_rem else 0)

        if force_num_split is not None:
            num_split = force_num_split
        else:
            num_split = 2 if (is_v7 and total_tiles >= 2
                              and total_tiles % 2 == 0) else 1

        main_elems = n_rows * _LANES
        if main_elems < n:
            # NOTE: prefix slice of an unaligned input may materialize one copy
            # per array in XLA (still cheaper than padding both); lane-aligned
            # inputs go through a pure bitcast reshape with zero copies.
            rho_main = rho[:main_elems]
            jel_main = jel[:main_elems]
        else:
            rho_main, jel_main = rho, jel
        rho2 = rho_main.reshape(n_rows, _LANES)
        jel2 = jel_main.reshape(n_rows, _LANES)

        run = functools.partial(
            _partial_sums, rho2, jel2, row_tile=row_tile,
            num_full_tiles=num_full_tiles, rows_rem=rows_rem,
            vmem_limit_bytes=vmem_limit)
        try:
            partial = run(num_split=num_split)
        except Exception:
            if num_split <= 1:
                raise
            partial = run(num_split=1)   # safe fallback if 2-core build fails

        jel_sum = jel_sum + jnp.sum(partial[:, 0])
        rho_sum = rho_sum + jnp.sum(partial[:, 1])
        tail_start = main_elems
    else:
        # Tiny problem (< 32*128 elements): not worth a kernel launch.
        tail_start = 0

    if tail_start < n:
        jel_sum = jel_sum + jnp.sum(jel[tail_start:].astype(jnp.float32))
        rho_sum = rho_sum + jnp.sum(rho[tail_start:].astype(jnp.float32))

    obj0_f = jnp.asarray(obj0, jnp.float32)
    dvf_f = jnp.asarray(desiredVolumeFraction, jnp.float32)
    objective = jel_sum / obj0_f
    volConstraint = (rho_sum / jnp.float32(n)) / dvf_f - 1.0
    return objective, volConstraint


def _check(nn_rho, Jelem, dvf, penal, obj0, **kw):
    obj, vol = topopt_loss(nn_rho, Jelem, dvf, penal, obj0, **kw)
    obj = jax.block_until_ready(obj)
    vol = jax.block_until_ready(vol)
    ref_obj = jnp.sum(Jelem.astype(jnp.float32)) / obj0
    ref_vol = jnp.mean(nn_rho.astype(jnp.float32)) / dvf - 1.0
    assert jnp.allclose(obj, ref_obj, rtol=2e-3, atol=1e-5), (obj, ref_obj)
    assert jnp.allclose(vol, ref_vol, rtol=2e-3, atol=1e-5), (vol, ref_vol)


if __name__ == "__main__":
    key = jax.random.PRNGKey(0)
    k1, k2, k3, k4, k5, k6 = jax.random.split(key, 6)

    desiredVolumeFraction = 0.5
    penal = 3.0
    obj0 = 2.5

    # Case 1: 64x64 element mesh (4096 elements), f32, lane-aligned, defaults.
    n1 = 64 * 64
    rho1 = jax.random.uniform(k1, (n1,), dtype=jnp.float32)
    jel1 = jax.random.uniform(k2, (n1,), dtype=jnp.float32) * 10.0
    _check(rho1, jel1, desiredVolumeFraction, penal, obj0)

    # Case 2: odd element count (not a multiple of 128), bf16 inputs, tiny row
    # tile -> exercises multi-tile grid, in-kernel upcast, partial-tile slab
    # masking, and the wrapper-side lane remainder.
    n2 = 6559
    rho2 = jax.random.uniform(k3, (n2,), dtype=jnp.float32).astype(jnp.bfloat16)
    jel2 = (jax.random.uniform(k4, (n2,), dtype=jnp.float32)
            * 10.0).astype(jnp.bfloat16)
    _check(rho2, jel2, desiredVolumeFraction, penal, obj0, max_row_tile=32)

    # Case 3: 96x96 mesh (9216 elements), f32, multiple full tiles plus a
    # partial row tile (72 rows with 32-row tiles).
    n3 = 96 * 96
    rho3 = jax.random.uniform(k5, (n3,), dtype=jnp.float32)
    jel3 = jax.random.uniform(k6, (n3,), dtype=jnp.float32) * 10.0
    _check(rho3, jel3, desiredVolumeFraction, penal, obj0, max_row_tile=32)

    print("KERNEL_OK")
</pallas_src>

<mosaic_0001>
module attributes {stable_mosaic.version = 11 : i64} {
  func.func @_topopt_sum_kernel(%arg0: i32, %arg1: i32, %arg2: memref<32x128xf32, #tpu.memory_space<vmem>>, %arg3: memref<32x128xf32, #tpu.memory_space<vmem>>, %arg4: memref<1x2x32x128xf32, #tpu.memory_space<vmem>>) attributes {dimension_semantics = [#tpu.dimension_semantics<arbitrary>, #tpu.dimension_semantics<arbitrary>], iteration_bounds = array<i64: 1, 1>, scalar_prefetch = 0 : i64, scratch_operands = 0 : i64, tpu.core_type = #tpu.core_type<tc>, window_params = [{transform_indices = @transform_0, window_bounds = array<i64: 32, 128>}, {transform_indices = @transform_1, window_bounds = array<i64: 32, 128>}, {transform_indices = @transform_2, window_bounds = array<i64: 1, 2, 32, 128>}]} {
    %c1_i32 = arith.constant 1 : i32
    %0 = arith.muli %arg0, %c1_i32 : i32
    %1 = arith.addi %0, %arg1 : i32
    %c0_i32 = arith.constant 0 : i32
    %2 = arith.cmpi eq, %arg1, %c0_i32 : i32
    %3 = arith.extui %2 : i1 to i32
    %c0_i32_0 = arith.constant 0 : i32
    %4 = arith.cmpi ne, %3, %c0_i32_0 : i32
    scf.if %4 {
      %cst = arith.constant 0.000000e+00 : f32
      %8 = vector.broadcast %cst : f32 to vector<1x2x32x128xf32>
      %c0 = arith.constant 0 : index
      %c0_3 = arith.constant 0 : index
      %c0_4 = arith.constant 0 : index
      %c0_5 = arith.constant 0 : index
      %9 = vector.load %arg4[%c0, %c0_3, %c0_4, %c0_5] : memref<1x2x32x128xf32, #tpu.memory_space<vmem>>, vector<1x2x32x128xf32>
      tpu.vector_store %arg4[%c0, %c0_3, %c0_4, %c0_5], %8 {strides = array<i32>} : memref<1x2x32x128xf32, #tpu.memory_space<vmem>>, vector<1x2x32x128xf32>,
    } else {
    }
    %c1_i32_1 = arith.constant 1 : i32
    %5 = arith.cmpi slt, %1, %c1_i32_1 : i32
    %6 = arith.extui %5 : i1 to i32
    %c0_i32_2 = arith.constant 0 : i32
    %7 = arith.cmpi ne, %6, %c0_i32_2 : i32
    scf.if %7 {
      %c0 = arith.constant 0 : index
      %c0_3 = arith.constant 0 : index
      %c0_4 = arith.constant 0 : index
      %c0_5 = arith.constant 0 : index
      %8 = vector.load %arg4[%c0, %c0_3, %c0_4, %c0_5] : memref<1x2x32x128xf32, #tpu.memory_space<vmem>>, vector<1x1x32x128xf32>
      %9 = vector.shape_cast %8 : vector<1x1x32x128xf32> to vector<32x128xf32>
      %c0_6 = arith.constant 0 : index
      %c0_7 = arith.constant 0 : index
      %10 = vector.load %arg3[%c0_6, %c0_7] : memref<32x128xf32, #tpu.memory_space<vmem>>, vector<32x128xf32>
      %11 = vector.shape_cast %10 : vector<32x128xf32> to vector<1x32x128xf32>
      %cst = arith.constant dense<0.000000e+00> : vector<32x128xf32>
      %12 = vector.multi_reduction <add>, %11, %cst [0] : vector<1x32x128xf32> to vector<32x128xf32>
      %13 = arith.addf %9, %12 : vector<32x128xf32>
      %c0_8 = arith.constant 0 : index
      %c0_9 = arith.constant 0 : index
      %c0_10 = arith.constant 0 : index
      %c0_11 = arith.constant 0 : index
      %14 = vector.load %arg4[%c0_8, %c0_9, %c0_10, %c0_11] : memref<1x2x32x128xf32, #tpu.memory_space<vmem>>, vector<1x1x32x128xf32>
      %15 = vector.shape_cast %14 : vector<1x1x32x128xf32> to vector<32x128xf32>
      %16 = vector.shape_cast %13 : vector<32x128xf32> to vector<1x1x32x128xf32>
      tpu.vector_store %arg4[%c0_8, %c0_9, %c0_10, %c0_11], %16 {strides = array<i32>} : memref<1x2x32x128xf32, #tpu.memory_space<vmem>>, vector<1x1x32x128xf32>,
      %c0_12 = arith.constant 0 : index
      %c1 = arith.constant 1 : index
      %c0_13 = arith.constant 0 : index
      %c0_14 = arith.constant 0 : index
      %17 = vector.load %arg4[%c0_12, %c1, %c0_13, %c0_14] : memref<1x2x32x128xf32, #tpu.memory_space<vmem>>, vector<1x1x32x128xf32>
      %18 = vector.shape_cast %17 : vector<1x1x32x128xf32> to vector<32x128xf32>
      %c0_15 = arith.constant 0 : index
      %c0_16 = arith.constant 0 : index
      %19 = vector.load %arg2[%c0_15, %c0_16] : memref<32x128xf32, #tpu.memory_space<vmem>>, vector<32x128xf32>
      %20 = vector.shape_cast %19 : vector<32x128xf32> to vector<1x32x128xf32>
      %cst_17 = arith.constant dense<0.000000e+00> : vector<32x128xf32>
      %21 = vector.multi_reduction <add>, %20, %cst_17 [0] : vector<1x32x128xf32> to vector<32x128xf32>
      %22 = arith.addf %18, %21 : vector<32x128xf32>
      %c0_18 = arith.constant 0 : index
      %c1_19 = arith.constant 1 : index
      %c0_20 = arith.constant 0 : index
      %c0_21 = arith.constant 0 : index
      %23 = vector.load %arg4[%c0_18, %c1_19, %c0_20, %c0_21] : memref<1x2x32x128xf32, #tpu.memory_space<vmem>>, vector<1x1x32x128xf32>
      %24 = vector.shape_cast %23 : vector<1x1x32x128xf32> to vector<32x128xf32>
      %25 = vector.shape_cast %22 : vector<32x128xf32> to vector<1x1x32x128xf32>
      tpu.vector_store %arg4[%c0_18, %c1_19, %c0_20, %c0_21], %25 {strides = array<i32>} : memref<1x2x32x128xf32, #tpu.memory_space<vmem>>, vector<1x1x32x128xf32>,
    } else {
    }
    return
  }
  func.func @transform_0(%arg0: i32, %arg1: i32) -> (i32, i32) {
    %c1_i32 = arith.constant 1 : i32
    %0 = arith.muli %arg0, %c1_i32 : i32
    %1 = arith.addi %0, %arg1 : i32
    %c0_i32 = arith.constant 0 : i32
    %c0_i32_0 = arith.constant 0 : i32
    return %1, %c0_i32 : i32, i32
  }
  func.func @transform_1(%arg0: i32, %arg1: i32) -> (i32, i32) {
    %c1_i32 = arith.constant 1 : i32
    %0 = arith.muli %arg0, %c1_i32 : i32
    %1 = arith.addi %0, %arg1 : i32
    %c0_i32 = arith.constant 0 : i32
    %c0_i32_0 = arith.constant 0 : i32
    return %1, %c0_i32 : i32, i32
  }
  func.func @transform_2(%arg0: i32, %arg1: i32) -> (i32, i32, i32, i32) {
    %c0_i32 = arith.constant 0 : i32
    %c0_i32_0 = arith.constant 0 : i32
    %c0_i32_1 = arith.constant 0 : i32
    %c0_i32_2 = arith.constant 0 : i32
    return %arg0, %c0_i32, %c0_i32_0, %c0_i32_1 : i32, i32, i32, i32
  }
}

</mosaic_0001>

<llo_original>
// kernel: tpu_custom_call.1
$region0: #{tpu_custom_call.1}
  #allocation0 [shape = 'u32[]', space=smem, size = 0x4, offset = 0x4, fixed_abs, tag = 'smem constant byte address 0x4 - core index']
  #allocation1 [shape = 'u32[144,128]{1,0:T(1,128)}', space=vmem, size = 0x12000, scoped, tag = 'internal scratch']
  %s0 = inlined_call_operand.hbm [shape: f32[32,128], index: 0, kind: input, shape index: {}]
  %s1 = inlined_call_operand.hbm [shape: f32[32,128], index: 1, kind: input, shape index: {}]
  %s2 = inlined_call_operand.hbm [shape: f32[1,2,32,128], index: 2, kind: output, shape index: {}]
  %s3 = sld [smem:[#allocation0]]
  $region34: #{tpu_custom_call.1} parent=0
    _
  %s5 = ssub.s32 1, %s3
  %s6 = scalar_select 0, %s5, %s3
  $region1: #{tpu_custom_call.1} parent=0
    #allocation2 [shape = 'u8[16384]{0}', space=vmem, size = 0x4000, scoped, tag = 'input window, operand 0, single buffered']
    #allocation3 [shape = 's32[1]{0}', space=sflag, size = 0x4, scoped, tag = 'scoped memory for tpu_custom_call.1']
    #allocation4 [shape = 's32[1]{0}', space=sflag, size = 0x4, scoped, tag = 'scoped memory for tpu_custom_call.1']
    #allocation5 [shape = 'u8[16384]{0}', space=vmem, size = 0x4000, scoped, tag = 'input window, operand 1, single buffered']
    #allocation6 [shape = 's32[1]{0}', space=sflag, size = 0x4, scoped, tag = 'scoped memory for tpu_custom_call.1']
    #allocation7 [shape = 'u8[32768]{0}', space=vmem, size = 0x8000, scoped, tag = 'output window, operand 0, single buffered']
    %7 = vsyncpa [#allocation3], 0
    %8 = vsyncpa [#allocation6], 0
    %9 = vsyncpa [#allocation4], 0
    // Predicated region
    $region2: #{tpu_custom_call.1} parent=1 // pred_check
      _
    $region3: #{tpu_custom_call.1} parent=1 // pred_check_branch
      %11 = sbr.rel (0) target = $region5
    $region4: #{tpu_custom_call.1} parent=1 // pred_region
      %s12 = sadd.s32 0, 0
      %s13 = smul.u32 4, %s12
      %s15 = ssub.s32 512, 512
      %16 = vsyncadd [#allocation3], %s15
      %s17 = smul.addr %s13, 128
      %s18 = scalar_lea.hbm %s0, %s17
      %s19 = sshll.u32 [#allocation2], 4
      %s20 = int_to_ptr.vmem [resolvable:$true] %s19
      %25 = dma.hbm_to_vmem [thread:$0]  %s18, 512, %s20, [#allocation3], 128, 128, 8
    $region5: #{tpu_custom_call.1} parent=1 // pred_fallthru
      _
    // Predicated region
    $region6: #{tpu_custom_call.1} parent=1 // pred_check
      _
    $region7: #{tpu_custom_call.1} parent=1 // pred_check_branch
      %27 = sbr.rel (0) target = $region9
    $region8: #{tpu_custom_call.1} parent=1 // pred_region
      %s28 = sadd.s32 0, 0
      %s29 = smul.u32 4, %s28
      %s31 = ssub.s32 512, 512
      %32 = vsyncadd [#allocation6], %s31
      %s33 = smul.addr %s29, 128
      %s34 = scalar_lea.hbm %s1, %s33
      %s35 = sshll.u32 [#allocation5], 4
      %s36 = int_to_ptr.vmem [resolvable:$true] %s35
      %41 = dma.hbm_to_vmem [thread:$0]  %s34, 512, %s36, [#allocation6], 128, 128, 8
    $region9: #{tpu_custom_call.1} parent=1 // pred_fallthru
      _
    // Predicated region
    $region10: #{tpu_custom_call.1} parent=1 // pred_check
      _
    $region11: #{tpu_custom_call.1} parent=1 // pred_check_branch
      %43 = sbr.rel (0) target = $region13
    $region12: #{tpu_custom_call.1} parent=1 // pred_region
      %44 = dma.done [#allocation3], 512
    $region13: #{tpu_custom_call.1} parent=1 // pred_fallthru
      _
    // Predicated region
    $region14: #{tpu_custom_call.1} parent=1 // pred_check
      _
    $region15: #{tpu_custom_call.1} parent=1 // pred_check_branch
      %46 = sbr.rel (0) target = $region17
    $region16: #{tpu_custom_call.1} parent=1 // pred_region
      %47 = dma.done [#allocation6], 512
    $region17: #{tpu_custom_call.1} parent=1 // pred_fallthru
      _
    %s48 = sadd.s32 0, 0
    %s49 = smul.u32 4, %s48
    %s50 = sadd.s32 0, 0
    %s51 = smul.u32 4, %s50
    %s52 = sadd.s32 0, 0
    %p53 = scmp.eq.s32.totalorder 0, 0
    // Predicated region
    $region18: #{tpu_custom_call.1} parent=1 // pred_check
      %p54 = pneg %p53
    $region19: #{tpu_custom_call.1} parent=1 // pred_check_branch
      %56 = sbr.rel (%p54) target = $region21
    $region20: #{tpu_custom_call.1} parent=1 // pred_region
      %57 = vst [vmem:[#allocation7] sm:$0xff] 0.0
      %58 = vst [vmem:[#allocation7 + $0x8] sm:$0xff] 0.0
      %59 = vst [vmem:[#allocation7 + $0x10] sm:$0xff] 0.0
      %60 = vst [vmem:[#allocation7 + $0x18] sm:$0xff] 0.0
      %61 = vst [vmem:[#allocation7 + $0x20] sm:$0xff] 0.0
      %62 = vst [vmem:[#allocation7 + $0x28] sm:$0xff] 0.0
      %63 = vst [vmem:[#allocation7 + $0x30] sm:$0xff] 0.0
      %64 = vst [vmem:[#allocation7 + $0x38] sm:$0xff] 0.0
    $region21: #{tpu_custom_call.1} parent=1 // pred_fallthru
      _
    %p65 = scmp.lt.s32.totalorder %s52, 1
    // Predicated region
    $region22: #{tpu_custom_call.1} parent=1 // pred_check
      %p66 = pneg %p65
    $region23: #{tpu_custom_call.1} parent=1 // pred_check_branch
      %68 = sbr.rel (%p66) target = $region25
    $region24: #{tpu_custom_call.1} parent=1 // pred_region
      %v69 = vld [vmem:[#allocation7] sm:$0xff]
      %v70 = vld [vmem:[#allocation7 + $0x8] sm:$0xff]
      %v71 = vld [vmem:[#allocation7 + $0x10] sm:$0xff]
      %v72 = vld [vmem:[#allocation7 + $0x18] sm:$0xff]
      %v73 = vld [vmem:[#allocation5] sm:$0xff]
      %v74 = vld [vmem:[#allocation5 + $0x8] sm:$0xff]
      %v75 = vld [vmem:[#allocation5 + $0x10] sm:$0xff]
      %v76 = vld [vmem:[#allocation5 + $0x18] sm:$0xff]
      %v77 = vadd.f32 %v73, 0.0
      %v78 = vadd.f32 %v74, 0.0
      %v79 = vadd.f32 %v75, 0.0
      %v80 = vadd.f32 %v76, 0.0
      %v81 = vadd.f32 %v69, %v77
      %v82 = vadd.f32 %v70, %v78
      %v83 = vadd.f32 %v71, %v79
      %v84 = vadd.f32 %v72, %v80
      %85 = vst [vmem:[#allocation7] sm:$0xff] %v81
      %86 = vst [vmem:[#allocation7 + $0x8] sm:$0xff] %v82
      %87 = vst [vmem:[#allocation7 + $0x10] sm:$0xff] %v83
      %88 = vst [vmem:[#allocation7 + $0x18] sm:$0xff] %v84
      %s89 = scalar_lea.vmem [#allocation7], 32
      %v90 = vld [vmem:[%s89] sm:$0xff]
      %v91 = vld [vmem:[%s89 + $0x8] sm:$0xff]
      %v92 = vld [vmem:[%s89 + $0x10] sm:$0xff]
      %v93 = vld [vmem:[%s89 + $0x18] sm:$0xff]
      %v94 = vld [vmem:[#allocation2] sm:$0xff]
      %v95 = vld [vmem:[#allocation2 + $0x8] sm:$0xff]
      %v96 = vld [vmem:[#allocation2 + $0x10] sm:$0xff]
      %v97 = vld [vmem:[#allocation2 + $0x18] sm:$0xff]
      %v98 = vadd.f32 %v94, 0.0
      %v99 = vadd.f32 %v95, 0.0
      %v100 = vadd.f32 %v96, 0.0
      %v101 = vadd.f32 %v97, 0.0
      %v102 = vadd.f32 %v90, %v98
      %v103 = vadd.f32 %v91, %v99
      %v104 = vadd.f32 %v92, %v100
      %v105 = vadd.f32 %v93, %v101
      %106 = vst [vmem:[%s89] sm:$0xff] %v102
      %107 = vst [vmem:[%s89 + $0x8] sm:$0xff] %v103
      %108 = vst [vmem:[%s89 + $0x10] sm:$0xff] %v104
      %109 = vst [vmem:[%s89 + $0x18] sm:$0xff] %v105
    $region25: #{tpu_custom_call.1} parent=1 // pred_fallthru
      _
    // Predicated region
    $region26: #{tpu_custom_call.1} parent=1 // pred_check
      _
    $region27: #{tpu_custom_call.1} parent=1 // pred_check_branch
      %111 = sbr.rel (0) target = $region29
    $region28: #{tpu_custom_call.1} parent=1 // pred_region
      %s113 = ssub.s32 1024, 1024
      %114 = vsyncadd [#allocation4], %s113
      %s115 = sshll.u32 [#allocation7], 4
      %s116 = int_to_ptr.vmem [resolvable:$true] %s115
      %121 = dma.vmem_to_hbm [thread:$0]  %s116, 1024, %s2, [#allocation4], 128, 128, 8
    $region29: #{tpu_custom_call.1} parent=1 // pred_fallthru
      _
    // Predicated region
    $region30: #{tpu_custom_call.1} parent=1 // pred_check
      _
    $region31: #{tpu_custom_call.1} parent=1 // pred_check_branch
      %123 = sbr.rel (0) target = $region33
    $region32: #{tpu_custom_call.1} parent=1 // pred_region
      %124 = dma.done [#allocation4], 1024
    $region33: #{tpu_custom_call.1} parent=1 // pred_fallthru
      _
    %125 = vsyncpa [#allocation3], 1
    %126 = vsyncpa [#allocation6], 1
    %127 = vsyncpa [#allocation4], 1

</llo_original>
